<compile_context>
chip_gen: v7x
topology: tpu7x:2x2x1
jax: 0.10.0
libtpu: 0.0.40
codegen_flags: <defaults>
</compile_context>

<pallas_src>
import functools
import math

import jax
import jax.numpy as jnp
from jax.experimental import pallas as pl
from jax.experimental.pallas import tpu as pltpu


def _read_kernel(x_ref, a_ref, b_ref, o_ref, *, scaling, tm, tn, rank,
                 a_resident, b_resident):
    i = pl.program_id(0)
    j = pl.program_id(1)

    if b_resident:
        row0 = pl.multiple_of(i * tm, tm)
        b_tile = b_ref[pl.ds(row0, tm), :]          # (tm, rank)
    else:
        b_tile = b_ref[...]                         # (tm, rank)
    if a_resident:
        col0 = pl.multiple_of(j * tn, tn)
        a_tile = a_ref[:, pl.ds(col0, tn)]          # (rank, tn)
    else:
        a_tile = a_ref[...]                         # (rank, tn)

    b_tile = b_tile.astype(jnp.float32)
    a_tile = a_tile.astype(jnp.float32) * scaling

    # rank is tiny (typically 4): unrolled outer-product accumulation on the
    # VPU -- avoids paying MXU push/pop latency for a K=4 matmul and hides
    # entirely under the HBM stream.
    delta = b_tile[:, 0:1] * a_tile[0:1, :]
    for r in range(1, rank):
        delta = delta + b_tile[:, r:r + 1] * a_tile[r:r + 1, :]

    o_ref[...] = (x_ref[...].astype(jnp.float32) + delta).astype(o_ref.dtype)


def _sublane_align(dtype):
    return 8 * max(1, 4 // jnp.dtype(dtype).itemsize)


def _round_up(v, m):
    return ((v + m - 1) // m) * m


def _aligned_tile(dim, align, max_tile):
    """Largest multiple of `align` that divides `dim` and is <= `max_tile`.
    Returns `dim` itself if dim <= max_tile, or if no aligned divisor exists
    (a full-extent block is always a legal block shape)."""
    if dim <= max_tile:
        return dim
    t = (max_tile // align) * align
    while t >= align:
        if dim % t == 0:
            return t
        t -= align
    return dim


def read_parametrization_forward(x, read_a, read_b, *, read_alpha=1, rank=4):
    """X + (read_B @ read_A).view(X.shape) * (read_alpha / rank)."""
    fan_out, fan_in = x.shape
    assert read_a.shape == (rank, fan_in)
    assert read_b.shape == (fan_out, rank)
    scaling = float(read_alpha) / float(rank)

    itemsize = jnp.dtype(x.dtype).itemsize
    lane_align = 128
    # tm must respect the sublane packing of every array it tiles (X/out and,
    # in the non-resident fallback, B).
    sub_align = max(_sublane_align(x.dtype), _sublane_align(read_b.dtype))

    # --- tile selection -----------------------------------------------------
    # Pure streaming kernel: big lane-dense blocks, while double-buffered
    # (X + out) blocks stay well inside the smallest VMEM budget (v7x: 64 MiB).
    MAX_BLOCK_BYTES = 8 * 1024 * 1024      # per X (= per out) block
    MAX_LANE_TILE = 16384                  # keep fan_in whole up to 16K lanes

    tn = _aligned_tile(fan_in, lane_align, MAX_LANE_TILE)
    row_bytes = tn * itemsize
    max_tm = max(sub_align, (MAX_BLOCK_BYTES // row_bytes) // sub_align * sub_align)
    tm = _aligned_tile(fan_out, sub_align, max_tm)

    grid = (fan_out // tm, fan_in // tn)

    # --- A / B residency ----------------------------------------------------
    # Keep them whole in VMEM (fetched once, sliced in-kernel) unless their
    # padded-to-(sublane,128) resident footprint would be large.
    RESIDENT_BYTES_CAP = 4 * 1024 * 1024
    a_vmem_bytes = (_round_up(rank, _sublane_align(read_a.dtype))
                    * _round_up(fan_in, lane_align)
                    * jnp.dtype(read_a.dtype).itemsize)
    b_vmem_bytes = (_round_up(fan_out, _sublane_align(read_b.dtype))
                    * _round_up(rank, lane_align)
                    * jnp.dtype(read_b.dtype).itemsize)
    a_resident = a_vmem_bytes <= RESIDENT_BYTES_CAP
    b_resident = b_vmem_bytes <= RESIDENT_BYTES_CAP

    if a_resident:
        a_spec = pl.BlockSpec((rank, fan_in), lambda i, j: (0, 0))
    else:
        a_spec = pl.BlockSpec((rank, tn), lambda i, j: (0, j))
    if b_resident:
        b_spec = pl.BlockSpec((fan_out, rank), lambda i, j: (0, 0))
    else:
        b_spec = pl.BlockSpec((tm, rank), lambda i, j: (i, 0))

    kernel = functools.partial(
        _read_kernel, scaling=scaling, tm=tm, tn=tn, rank=rank,
        a_resident=a_resident, b_resident=b_resident)

    bytes_accessed = (
        2 * fan_out * fan_in * itemsize
        + rank * fan_in * jnp.dtype(read_a.dtype).itemsize
        + fan_out * rank * jnp.dtype(read_b.dtype).itemsize)
    cost = pl.CostEstimate(
        flops=2 * fan_out * fan_in * rank + fan_out * fan_in,
        transcendentals=0,
        bytes_accessed=bytes_accessed)

    return pl.pallas_call(
        kernel,
        out_shape=jax.ShapeDtypeStruct((fan_out, fan_in), x.dtype),
        grid_spec=pltpu.PrefetchScalarGridSpec(
            num_scalar_prefetch=0,
            grid=grid,
            in_specs=[
                pl.BlockSpec((tm, tn), lambda i, j: (i, j)),   # X tile
                a_spec,                                        # read_A
                b_spec,                                        # read_B
            ],
            out_specs=pl.BlockSpec((tm, tn), lambda i, j: (i, j)),
        ),
        compiler_params=pltpu.CompilerParams(
            dimension_semantics=("parallel", "parallel"),
            vmem_limit_bytes=64 * 1024 * 1024,
        ),
        cost_estimate=cost,
    )(x, read_a, read_b)


if __name__ == "__main__":
    # Shapes consistent with ReadParametrization.from_linear(nn.Linear(128, 32)):
    fan_in, fan_out, rank, read_alpha = 128, 32, 4, 1

    key = jax.random.PRNGKey(0)
    kx, ka, kb = jax.random.split(key, 3)

    # X: the weight being parametrized, (fan_out, fan_in).
    x = jax.random.normal(kx, (fan_out, fan_in), dtype=jnp.float32)

    # read_A init mirrors nn.init.kaiming_uniform_(A, a=sqrt(5)):
    #   bound = sqrt(2/(1+5)) * sqrt(3/fan_in) = 1/sqrt(fan_in)
    bound = 1.0 / math.sqrt(fan_in)
    read_a = jax.random.uniform(
        ka, (rank, fan_in), minval=-bound, maxval=bound, dtype=jnp.float32
    )
    # read_B is zeros in __init__; use a small deterministic random init here so
    # the kernel's outer-product path is exercised non-trivially.
    read_b = 0.01 * jax.random.normal(kb, (fan_out, rank), dtype=jnp.float32)

    # read_dropout_p = 0.0 -> dropout_fn is identity, so no mask multiply needed.

    y = read_parametrization_forward(
        x, read_a, read_b, read_alpha=read_alpha, rank=rank
    )
    jax.block_until_ready(y)

    # Pure-JAX reference check.
    y_ref = x + (read_b @ read_a).reshape(x.shape) * (read_alpha / rank)
    assert jnp.allclose(y, y_ref, atol=1e-5, rtol=1e-5), "mismatch vs reference"

    print("KERNEL_OK")
</pallas_src>

<mosaic_0001>
module attributes {stable_mosaic.version = 11 : i64} {
  func.func @_read_kernel(%arg0: i32, %arg1: i32, %arg2: memref<32x128xf32, #tpu.memory_space<vmem>>, %arg3: memref<4x128xf32, #tpu.memory_space<vmem>>, %arg4: memref<32x4xf32, #tpu.memory_space<vmem>>, %arg5: memref<32x128xf32, #tpu.memory_space<vmem>>) attributes {dimension_semantics = [#tpu.dimension_semantics<parallel>, #tpu.dimension_semantics<parallel>], iteration_bounds = array<i64: 1, 1>, scalar_prefetch = 0 : i64, scratch_operands = 0 : i64, tpu.core_type = #tpu.core_type<tc>, window_params = [{transform_indices = @transform_0, window_bounds = array<i64: 32, 128>}, {pipeline_mode = #tpu.pipeline_mode<synchronous>, transform_indices = @transform_1, window_bounds = array<i64: 4, 128>}, {pipeline_mode = #tpu.pipeline_mode<synchronous>, transform_indices = @transform_2, window_bounds = array<i64: 32, 4>}, {transform_indices = @transform_3, window_bounds = array<i64: 32, 128>}]} {
    %c32_i32 = arith.constant 32 : i32
    %0 = arith.muli %arg0, %c32_i32 : i32
    %1 = tpu.assume_multiple %0, 32 : i32
    %2 = arith.index_cast %1 : i32 to index
    %c0 = arith.constant 0 : index
    %3 = vector.load %arg4[%2, %c0] : memref<32x4xf32, #tpu.memory_space<vmem>>, vector<32x4xf32>
    %c128_i32 = arith.constant 128 : i32
    %4 = arith.muli %arg1, %c128_i32 : i32
    %5 = tpu.assume_multiple %4, 128 : i32
    %c0_0 = arith.constant 0 : index
    %6 = arith.index_cast %5 : i32 to index
    %7 = vector.load %arg3[%c0_0, %6] : memref<4x128xf32, #tpu.memory_space<vmem>>, vector<4x128xf32>
    %cst = arith.constant 2.500000e-01 : f32
    %8 = vector.broadcast %cst : f32 to vector<4x128xf32>
    %9 = arith.mulf %7, %8 : vector<4x128xf32>
    %10 = vector.extract_strided_slice %3 {offsets = [0, 0], sizes = [32, 1], strides = [1, 1]} : vector<32x4xf32> to vector<32x1xf32>
    %11 = vector.extract_strided_slice %9 {offsets = [0, 0], sizes = [1, 128], strides = [1, 1]} : vector<4x128xf32> to vector<1x128xf32>
    %12 = vector.broadcast %10 : vector<32x1xf32> to vector<32x128xf32>
    %13 = vector.broadcast %11 : vector<1x128xf32> to vector<32x128xf32>
    %14 = arith.mulf %12, %13 : vector<32x128xf32>
    %15 = vector.extract_strided_slice %3 {offsets = [0, 1], sizes = [32, 1], strides = [1, 1]} : vector<32x4xf32> to vector<32x1xf32>
    %16 = vector.extract_strided_slice %9 {offsets = [1, 0], sizes = [1, 128], strides = [1, 1]} : vector<4x128xf32> to vector<1x128xf32>
    %17 = vector.broadcast %15 : vector<32x1xf32> to vector<32x128xf32>
    %18 = vector.broadcast %16 : vector<1x128xf32> to vector<32x128xf32>
    %19 = arith.mulf %17, %18 : vector<32x128xf32>
    %20 = arith.addf %14, %19 : vector<32x128xf32>
    %21 = vector.extract_strided_slice %3 {offsets = [0, 2], sizes = [32, 1], strides = [1, 1]} : vector<32x4xf32> to vector<32x1xf32>
    %22 = vector.extract_strided_slice %9 {offsets = [2, 0], sizes = [1, 128], strides = [1, 1]} : vector<4x128xf32> to vector<1x128xf32>
    %23 = vector.broadcast %21 : vector<32x1xf32> to vector<32x128xf32>
    %24 = vector.broadcast %22 : vector<1x128xf32> to vector<32x128xf32>
    %25 = arith.mulf %23, %24 : vector<32x128xf32>
    %26 = arith.addf %20, %25 : vector<32x128xf32>
    %27 = vector.extract_strided_slice %3 {offsets = [0, 3], sizes = [32, 1], strides = [1, 1]} : vector<32x4xf32> to vector<32x1xf32>
    %28 = vector.extract_strided_slice %9 {offsets = [3, 0], sizes = [1, 128], strides = [1, 1]} : vector<4x128xf32> to vector<1x128xf32>
    %29 = vector.broadcast %27 : vector<32x1xf32> to vector<32x128xf32>
    %30 = vector.broadcast %28 : vector<1x128xf32> to vector<32x128xf32>
    %31 = arith.mulf %29, %30 : vector<32x128xf32>
    %32 = arith.addf %26, %31 : vector<32x128xf32>
    %c0_1 = arith.constant 0 : index
    %c0_2 = arith.constant 0 : index
    %33 = vector.load %arg2[%c0_1, %c0_2] : memref<32x128xf32, #tpu.memory_space<vmem>>, vector<32x128xf32>
    %34 = arith.addf %33, %32 : vector<32x128xf32>
    %c0_3 = arith.constant 0 : index
    %c0_4 = arith.constant 0 : index
    %35 = vector.load %arg5[%c0_3, %c0_4] : memref<32x128xf32, #tpu.memory_space<vmem>>, vector<32x128xf32>
    tpu.vector_store %arg5[%c0_3, %c0_4], %34 {strides = array<i32>} : memref<32x128xf32, #tpu.memory_space<vmem>>, vector<32x128xf32>,
    return
  }
  func.func @transform_0(%arg0: i32, %arg1: i32) -> (i32, i32) {
    %c0_i32 = arith.constant 0 : i32
    return %arg0, %arg1 : i32, i32
  }
  func.func @transform_1(%arg0: i32, %arg1: i32) -> (i32, i32) {
    %c0_i32 = arith.constant 0 : i32
    %c0_i32_0 = arith.constant 0 : i32
    %c0_i32_1 = arith.constant 0 : i32
    return %c0_i32, %c0_i32_0 : i32, i32
  }
  func.func @transform_2(%arg0: i32, %arg1: i32) -> (i32, i32) {
    %c0_i32 = arith.constant 0 : i32
    %c0_i32_0 = arith.constant 0 : i32
    %c0_i32_1 = arith.constant 0 : i32
    return %c0_i32, %c0_i32_0 : i32, i32
  }
  func.func @transform_3(%arg0: i32, %arg1: i32) -> (i32, i32) {
    %c0_i32 = arith.constant 0 : i32
    return %arg0, %arg1 : i32, i32
  }
}

</mosaic_0001>

<llo_original>
// kernel: tpu_custom_call.1
$region0: #{tpu_custom_call.1}
  #allocation0 [shape = 'u32[]', space=smem, size = 0x4, offset = 0x4, fixed_abs, tag = 'smem constant byte address 0x4 - core index']
  #allocation1 [shape = 'u32[144,128]{1,0:T(1,128)}', space=vmem, size = 0x12000, scoped, tag = 'internal scratch']
  %s0 = inlined_call_operand.hbm [shape: f32[32,128], index: 0, kind: input, shape index: {}]
  %s1 = inlined_call_operand.hbm [shape: f32[4,128], index: 1, kind: input, shape index: {}]
  %s2 = inlined_call_operand.hbm [shape: f32[32,4], index: 2, kind: input, shape index: {}]
  %s3 = inlined_call_operand.hbm [shape: f32[32,128], index: 3, kind: output, shape index: {}]
  %s4 = sld [smem:[#allocation0]]
  $region34: #{tpu_custom_call.1} parent=0
    _
  %s6 = ssub.s32 1, %s4
  %s7 = scalar_select 0, %s6, %s4
  $region1: #{tpu_custom_call.1} parent=0
    #allocation2 [shape = 'u8[16384]{0}', space=vmem, size = 0x4000, scoped, tag = 'input window, operand 0, single buffered']
    #allocation3 [shape = 's32[1]{0}', space=sflag, size = 0x4, scoped, tag = 'scoped memory for tpu_custom_call.1']
    #allocation4 [shape = 's32[1]{0}', space=sflag, size = 0x4, scoped, tag = 'scoped memory for tpu_custom_call.1']
    #allocation5 [shape = 'u8[2048]{0}', space=vmem, size = 0x800, scoped, tag = 'input window, operand 1, single buffered']
    #allocation6 [shape = 's32[1]{0}', space=sflag, size = 0x4, scoped, tag = 'scoped memory for tpu_custom_call.1']
    #allocation7 [shape = 'u8[16384]{0}', space=vmem, size = 0x4000, scoped, tag = 'input window, operand 2, single buffered']
    #allocation8 [shape = 'u8[16384]{0}', space=vmem, size = 0x4000, scoped, tag = 'output window, operand 0, single buffered']
    %8 = vsyncpa [#allocation3], 0
    %9 = vsyncpa [#allocation6], 0
    %10 = vsyncpa [#allocation4], 0
    // Predicated region
    $region2: #{tpu_custom_call.1} parent=1 // pred_check
      _
    $region3: #{tpu_custom_call.1} parent=1 // pred_check_branch
      %12 = sbr.rel (0) target = $region5
    $region4: #{tpu_custom_call.1} parent=1 // pred_region
      %s14 = ssub.s32 512, 512
      %15 = vsyncadd [#allocation3], %s14
      %s16 = sshll.u32 [#allocation2], 4
      %s17 = int_to_ptr.vmem [resolvable:$true] %s16
      %22 = dma.hbm_to_vmem [thread:$0]  %s0, 512, %s17, [#allocation3], 128, 128, 8
    $region5: #{tpu_custom_call.1} parent=1 // pred_fallthru
      _
    // Predicated region
    $region6: #{tpu_custom_call.1} parent=1 // pred_check
      _
    $region7: #{tpu_custom_call.1} parent=1 // pred_check_branch
      %24 = sbr.rel (0) target = $region9
    $region8: #{tpu_custom_call.1} parent=1 // pred_region
      %s26 = ssub.s32 64, 64
      %27 = vsyncadd [#allocation6], %s26
      %s29 = sshll.u32 [#allocation5], 4
      %s30 = int_to_ptr.vmem [resolvable:$true] %s29
      %32 = dma.hbm_to_vmem [thread:$0]  %s1, 64, %s30, [#allocation6]
    $region9: #{tpu_custom_call.1} parent=1 // pred_fallthru
      _
    // Predicated region
    $region10: #{tpu_custom_call.1} parent=1 // pred_check
      _
    $region11: #{tpu_custom_call.1} parent=1 // pred_check_branch
      %34 = sbr.rel (0) target = $region13
    $region12: #{tpu_custom_call.1} parent=1 // pred_region
      %s36 = ssub.s32 512, 512
      %37 = vsyncadd [#allocation6], %s36
      %s38 = sshll.u32 [#allocation7], 4
      %s39 = int_to_ptr.vmem [resolvable:$true] %s38
      %44 = dma.hbm_to_vmem [thread:$0]  %s2, 512, %s39, [#allocation6], 128, 128, 8
    $region13: #{tpu_custom_call.1} parent=1 // pred_fallthru
      _
    // Predicated region
    $region14: #{tpu_custom_call.1} parent=1 // pred_check
      _
    $region15: #{tpu_custom_call.1} parent=1 // pred_check_branch
      %46 = sbr.rel (0) target = $region17
    $region16: #{tpu_custom_call.1} parent=1 // pred_region
      %47 = dma.done [#allocation3], 512
    $region17: #{tpu_custom_call.1} parent=1 // pred_fallthru
      _
    // Predicated region
    $region18: #{tpu_custom_call.1} parent=1 // pred_check
      _
    $region19: #{tpu_custom_call.1} parent=1 // pred_check_branch
      %49 = sbr.rel (0) target = $region21
    $region20: #{tpu_custom_call.1} parent=1 // pred_region
      %50 = dma.done [#allocation6], 64
    $region21: #{tpu_custom_call.1} parent=1 // pred_fallthru
      _
    // Predicated region
    $region22: #{tpu_custom_call.1} parent=1 // pred_check
      _
    $region23: #{tpu_custom_call.1} parent=1 // pred_check_branch
      %52 = sbr.rel (0) target = $region25
    $region24: #{tpu_custom_call.1} parent=1 // pred_region
      %53 = dma.done [#allocation6], 512
    $region25: #{tpu_custom_call.1} parent=1 // pred_fallthru
      _
    %s54 = smul.u32 0, 32
    %s55 = scalar_lea.vmem [#allocation7], %s54
    %v56 = vld [vmem:[%s55] sm:$0xff]
    %v57 = vld [vmem:[%s55 + $0x8] sm:$0xff]
    %v58 = vld [vmem:[%s55 + $0x10] sm:$0xff]
    %v59 = vld [vmem:[%s55 + $0x18] sm:$0xff]
    %s60 = smul.u32 0, 128
    %s61 = sshra.s32 %s60, 7
    %s62 = sand.u32 %s60, 127
    %s63 = scalar_lea.vmem [#allocation5], %s61
    %v64 = vld [vmem:[%s63] sm:$0xf]
    %v65 = vmul.f32 %v64, 0.25
    %67 = vset.pattern.permute.xlu0 0
    %68 = vperm.xlu0 %67, %v56
    %v69 = vpop.permute.xlu0 %68
    %72 = vset.pattern.permute.xlu0 0
    %73 = vperm.xlu0 %72, %v57
    %v74 = vpop.permute.xlu0 %73
    %77 = vset.pattern.permute.xlu0 0
    %78 = vperm.xlu0 %77, %v58
    %v79 = vpop.permute.xlu0 %78
    %82 = vset.pattern.permute.xlu0 0
    %83 = vperm.xlu0 %82, %v59
    %v84 = vpop.permute.xlu0 %83
    %v86 = vlaneseq
    %v87 = vshrl.u32 %v86, 7
    %v88 = vsub.s32 0, %v87
    %v89 = vrot.slane %v65, %v88
    %v90 = vmul.f32 %v69, %v89
    %v91 = vmul.f32 %v74, %v89
    %v92 = vmul.f32 %v79, %v89
    %v93 = vmul.f32 %v84, %v89
    %94 = vset.pattern.permute.xlu0 1
    %95 = vperm.xlu0 %94, %v56
    %v96 = vpop.permute.xlu0 %95
    %98 = vset.pattern.permute.xlu0 1
    %99 = vperm.xlu0 %98, %v57
    %v100 = vpop.permute.xlu0 %99
    %102 = vset.pattern.permute.xlu0 1
    %103 = vperm.xlu0 %102, %v58
    %v104 = vpop.permute.xlu0 %103
    %106 = vset.pattern.permute.xlu0 1
    %107 = vperm.xlu0 %106, %v59
    %v108 = vpop.permute.xlu0 %107
    %v110 = vlaneseq
    %v111 = vshrl.u32 %v110, 7
    %v112 = vsub.s32 1, %v111
    %v113 = vrot.slane %v65, %v112
    %v114 = vmul.f32 %v96, %v113
    %v115 = vmul.f32 %v100, %v113
    %v116 = vmul.f32 %v104, %v113
    %v117 = vmul.f32 %v108, %v113
    %v118 = vadd.f32 %v90, %v114
    %v119 = vadd.f32 %v91, %v115
    %v120 = vadd.f32 %v92, %v116
    %v121 = vadd.f32 %v93, %v117
    %122 = vset.pattern.permute.xlu0 2
    %123 = vperm.xlu0 %122, %v56
    %v124 = vpop.permute.xlu0 %123
    %126 = vset.pattern.permute.xlu0 2
    %127 = vperm.xlu0 %126, %v57
    %v128 = vpop.permute.xlu0 %127
    %130 = vset.pattern.permute.xlu0 2
    %131 = vperm.xlu0 %130, %v58
    %v132 = vpop.permute.xlu0 %131
    %134 = vset.pattern.permute.xlu0 2
    %135 = vperm.xlu0 %134, %v59
    %v136 = vpop.permute.xlu0 %135
    %v138 = vlaneseq
    %v139 = vshrl.u32 %v138, 7
    %v140 = vsub.s32 2, %v139
    %v141 = vrot.slane %v65, %v140
    %v142 = vmul.f32 %v124, %v141
    %v143 = vmul.f32 %v128, %v141
    %v144 = vmul.f32 %v132, %v141
    %v145 = vmul.f32 %v136, %v141
    %v146 = vadd.f32 %v118, %v142
    %v147 = vadd.f32 %v119, %v143
    %v148 = vadd.f32 %v120, %v144
    %v149 = vadd.f32 %v121, %v145
    %150 = vset.pattern.permute.xlu0 3
    %151 = vperm.xlu0 %150, %v56
    %v152 = vpop.permute.xlu0 %151
    %154 = vset.pattern.permute.xlu0 3
    %155 = vperm.xlu0 %154, %v57
    %v156 = vpop.permute.xlu0 %155
    %158 = vset.pattern.permute.xlu0 3
    %159 = vperm.xlu0 %158, %v58
    %v160 = vpop.permute.xlu0 %159
    %162 = vset.pattern.permute.xlu0 3
    %163 = vperm.xlu0 %162, %v59
    %v164 = vpop.permute.xlu0 %163
    %v166 = vlaneseq
    %v167 = vshrl.u32 %v166, 7
    %v168 = vsub.s32 3, %v167
    %v169 = vrot.slane %v65, %v168
    %v170 = vmul.f32 %v152, %v169
    %v171 = vmul.f32 %v156, %v169
    %v172 = vmul.f32 %v160, %v169
    %v173 = vmul.f32 %v164, %v169
    %v174 = vadd.f32 %v146, %v170
    %v175 = vadd.f32 %v147, %v171
    %v176 = vadd.f32 %v148, %v172
    %v177 = vadd.f32 %v149, %v173
    %v178 = vld [vmem:[#allocation2] sm:$0xff]
    %v179 = vld [vmem:[#allocation2 + $0x8] sm:$0xff]
    %v180 = vld [vmem:[#allocation2 + $0x10] sm:$0xff]
    %v181 = vld [vmem:[#allocation2 + $0x18] sm:$0xff]
    %v182 = vadd.f32 %v178, %v174
    %v183 = vadd.f32 %v179, %v175
    %v184 = vadd.f32 %v180, %v176
    %v185 = vadd.f32 %v181, %v177
    %186 = vst [vmem:[#allocation8] sm:$0xff] %v182
    %187 = vst [vmem:[#allocation8 + $0x8] sm:$0xff] %v183
    %188 = vst [vmem:[#allocation8 + $0x10] sm:$0xff] %v184
    %189 = vst [vmem:[#allocation8 + $0x18] sm:$0xff] %v185
    // Predicated region
    $region26: #{tpu_custom_call.1} parent=1 // pred_check
      _
    $region27: #{tpu_custom_call.1} parent=1 // pred_check_branch
      %191 = sbr.rel (0) target = $region29
    $region28: #{tpu_custom_call.1} parent=1 // pred_region
      %s193 = ssub.s32 512, 512
      %194 = vsyncadd [#allocation4], %s193
      %s195 = sshll.u32 [#allocation8], 4
      %s196 = int_to_ptr.vmem [resolvable:$true] %s195
      %201 = dma.vmem_to_hbm [thread:$0]  %s196, 512, %s3, [#allocation4], 128, 128, 8
    $region29: #{tpu_custom_call.1} parent=1 // pred_fallthru
      _
    // Predicated region
    $region30: #{tpu_custom_call.1} parent=1 // pred_check
      _
    $region31: #{tpu_custom_call.1} parent=1 // pred_check_branch
      %203 = sbr.rel (0) target = $region33
    $region32: #{tpu_custom_call.1} parent=1 // pred_region
      %204 = dma.done [#allocation4], 512
    $region33: #{tpu_custom_call.1} parent=1 // pred_fallthru
      _
    %205 = vsyncpa [#allocation3], 1
    %206 = vsyncpa [#allocation6], 1
    %207 = vsyncpa [#allocation4], 1

</llo_original>
